<compile_context>
chip_gen: v5e
topology: v5e:2x2
jax: 0.10.0
libtpu: 0.0.40
codegen_flags: <defaults>
</compile_context>

<pallas_src>
import jax
import jax.numpy as jnp
from jax import lax
from jax.experimental import pallas as pl
from jax.experimental.pallas import tpu as pltpu

BN_EPS = 1e-5


# ---------------------------------------------------------------------------
# Kernels
# ---------------------------------------------------------------------------
def _fc_bn_relu_kernel(x_ref, w_ref, gb_ref, o_ref):
    """One feature tile: y = x @ W_tile^T ; BN (batch stats) ; ReLU."""
    # bf16 inputs to the MXU, f32 accumulation.
    x = x_ref[...].astype(jnp.bfloat16)          # (N, K)
    w = w_ref[...].astype(jnp.bfloat16)          # (TN, K)  -- PyTorch layout

    # Contract on K of both operands: (N, K) x (TN, K) -> (N, TN). No transpose.
    # Linear bias is intentionally omitted: training-mode BN subtracts the
    # batch mean, so a per-feature bias cancels exactly.
    y = lax.dot_general(x, w, (((1,), (1,)), ((), ())),
                        preferred_element_type=jnp.float32)   # (N, TN) f32

    gamma = gb_ref[0:1, :]                       # (1, TN)
    beta = gb_ref[1:2, :]                        # (1, TN)

    # BatchNorm1d, training mode: per-feature stats over batch, biased var.
    mean = jnp.mean(y, axis=0, keepdims=True)                 # (1, TN)
    centered = y - mean                                       # reuse below
    var = jnp.mean(centered * centered, axis=0, keepdims=True)

    # Fold into a single per-feature scale/shift -> one FMA per element.
    scale = gamma * lax.rsqrt(var + BN_EPS)                   # (1, TN)
    bn = centered * scale + beta

    o_ref[...] = jnp.maximum(bn, 0.0).astype(o_ref.dtype)     # ReLU


def _fc_relu_kernel(x_ref, w_ref, b_ref, o_ref):
    """with_bn=False path: ReLU(x @ W_tile^T + b_tile)."""
    x = x_ref[...].astype(jnp.bfloat16)
    w = w_ref[...].astype(jnp.bfloat16)
    y = lax.dot_general(x, w, (((1,), (1,)), ((), ())),
                        preferred_element_type=jnp.float32)
    y = y + b_ref[...]                                         # (1,TN) broadcast
    o_ref[...] = jnp.maximum(y, 0.0).astype(o_ref.dtype)


# ---------------------------------------------------------------------------
# Wrapper
# ---------------------------------------------------------------------------
def _pick_feature_tile(out_dim, max_tn=512):
    """Lane-dense feature tile (multiple of 128) that divides out_dim."""
    if out_dim % 128 != 0:
        return out_dim                      # odd sizes: single full-width tile
    tn = 128
    while tn * 2 <= max_tn and out_dim % (tn * 2) == 0:
        tn *= 2
    return tn


def fully_connected_forward(x, weight, bias, gamma=None, beta=None,
                            with_bn=True):
    """x: (N, inp_dim); weight: (out_dim, inp_dim) (PyTorch convention)."""
    n, k = x.shape
    out_dim = weight.shape[0]
    tn = _pick_feature_tile(out_dim)
    grid = (out_dim // tn,)

    cost = pl.CostEstimate(
        flops=2 * n * k * out_dim,
        transcendentals=out_dim if with_bn else 0,
        bytes_accessed=(x.size + weight.size + 2 * out_dim + n * out_dim) * 4,
    )
    cparams = pltpu.CompilerParams(
        dimension_semantics=("parallel",),          # feature tiles independent
        vmem_limit_bytes=32 * 1024 * 1024,
    )

    x_spec = pl.BlockSpec((n, k), lambda j: (0, 0))           # resident
    w_spec = pl.BlockSpec((tn, k), lambda j: (j, 0))          # streamed columns
    o_spec = pl.BlockSpec((n, tn), lambda j: (0, j))          # lane-dense out

    if with_bn:
        # Pack gamma/beta into one (2, out_dim) array -> one DMA per tile.
        gb = jnp.stack([gamma.reshape(out_dim),
                        beta.reshape(out_dim)], axis=0)        # (2, out_dim)
        return pl.pallas_call(
            _fc_bn_relu_kernel,
            out_shape=jax.ShapeDtypeStruct((n, out_dim), jnp.float32),
            grid_spec=pltpu.PrefetchScalarGridSpec(
                num_scalar_prefetch=0,
                grid=grid,
                in_specs=[x_spec, w_spec,
                          pl.BlockSpec((2, tn), lambda j: (0, j))],
                out_specs=o_spec,
            ),
            compiler_params=cparams,
            cost_estimate=cost,
        )(x, weight, gb)

    b2 = bias.reshape(1, out_dim)
    return pl.pallas_call(
        _fc_relu_kernel,
        out_shape=jax.ShapeDtypeStruct((n, out_dim), jnp.float32),
        grid_spec=pltpu.PrefetchScalarGridSpec(
            num_scalar_prefetch=0,
            grid=grid,
            in_specs=[x_spec, w_spec,
                      pl.BlockSpec((1, tn), lambda j: (0, j))],
            out_specs=o_spec,
        ),
        compiler_params=cparams,
        cost_estimate=cost,
    )(x, weight, b2)


# ---------------------------------------------------------------------------
# Pure-JAX references
# ---------------------------------------------------------------------------
def _reference_bn(x, weight, bias, gamma, beta):
    y = x @ weight.T + bias
    mean = jnp.mean(y, axis=0, keepdims=True)
    var = jnp.mean((y - mean) ** 2, axis=0, keepdims=True)
    bn = (y - mean) / jnp.sqrt(var + BN_EPS) * gamma + beta
    return jnp.maximum(bn, 0.0)


def _reference_nobn(x, weight, bias):
    return jnp.maximum(x @ weight.T + bias, 0.0)


# ---------------------------------------------------------------------------
if __name__ == "__main__":
    # Small shapes consistent with nn.Linear(inp_dim, out_dim) + BatchNorm1d.
    N, INP_DIM, OUT_DIM = 8, 32, 128

    key = jax.random.PRNGKey(0)
    kx, kw, kb = jax.random.split(key, 3)

    x = jax.random.normal(kx, (N, INP_DIM), dtype=jnp.float32)

    # PyTorch-style init: Linear uniform bound, BN gamma=1 / beta=0 defaults.
    bound = 1.0 / (INP_DIM ** 0.5)
    weight = jax.random.uniform(kw, (OUT_DIM, INP_DIM), jnp.float32,
                                minval=-bound, maxval=bound)
    bias = jax.random.uniform(kb, (OUT_DIM,), jnp.float32,
                              minval=-bound, maxval=bound)
    gamma = jnp.ones((OUT_DIM,), jnp.float32)
    beta = jnp.zeros((OUT_DIM,), jnp.float32)

    # Default path: Linear -> BatchNorm1d (training stats) -> ReLU
    out = fully_connected_forward(x, weight, bias, gamma, beta, with_bn=True)
    out = jax.block_until_ready(out)
    ref = _reference_bn(x, weight, bias, gamma, beta)
    assert out.shape == (N, OUT_DIM)
    # bf16 matmul inputs -> tolerance loosened accordingly (BN/ReLU in f32).
    assert jnp.allclose(out, ref, atol=2e-2, rtol=2e-2), (
        float(jnp.max(jnp.abs(out - ref))))

    # with_bn=False path: Linear -> ReLU
    out2 = fully_connected_forward(x, weight, bias, with_bn=False)
    out2 = jax.block_until_ready(out2)
    ref2 = _reference_nobn(x, weight, bias)
    assert out2.shape == (N, OUT_DIM)
    assert jnp.allclose(out2, ref2, atol=2e-2, rtol=2e-2), (
        float(jnp.max(jnp.abs(out2 - ref2))))

    # TODO(synk): running_mean/running_var side-effect updates of BatchNorm1d
    # (training-mode bookkeeping) are not produced; only the forward output is.
    print("KERNEL_OK")
</pallas_src>

<mosaic_0001>
module attributes {stable_mosaic.version = 11 : i64} {
  func.func @_fc_bn_relu_kernel(%arg0: i32, %arg1: memref<8x32xf32, #tpu.memory_space<vmem>>, %arg2: memref<128x32xf32, #tpu.memory_space<vmem>>, %arg3: memref<2x128xf32, #tpu.memory_space<vmem>>, %arg4: memref<8x128xf32, #tpu.memory_space<vmem>>) attributes {dimension_semantics = [#tpu.dimension_semantics<parallel>], iteration_bounds = array<i64: 1>, scalar_prefetch = 0 : i64, scratch_operands = 0 : i64, tpu.core_type = #tpu.core_type<tc>, window_params = [{pipeline_mode = #tpu.pipeline_mode<synchronous>, transform_indices = @transform_0, window_bounds = array<i64: 8, 32>}, {transform_indices = @transform_1, window_bounds = array<i64: 128, 32>}, {transform_indices = @transform_2, window_bounds = array<i64: 2, 128>}, {transform_indices = @transform_3, window_bounds = array<i64: 8, 128>}]} {
    %c0 = arith.constant 0 : index
    %c0_0 = arith.constant 0 : index
    %0 = vector.load %arg1[%c0, %c0_0] : memref<8x32xf32, #tpu.memory_space<vmem>>, vector<8x32xf32>
    %1 = arith.truncf %0 : vector<8x32xf32> to vector<8x32xbf16>
    %c0_1 = arith.constant 0 : index
    %c0_2 = arith.constant 0 : index
    %2 = vector.load %arg2[%c0_1, %c0_2] : memref<128x32xf32, #tpu.memory_space<vmem>>, vector<128x32xf32>
    %3 = arith.truncf %2 : vector<128x32xf32> to vector<128x32xbf16>
    %cst = arith.constant dense<0.000000e+00> : vector<8x128xf32>
    %4 = tpu.matmul %1, %3, %cst {dimension_numbers = #tpu.dot_dimension_numbers<[1], [1], [0], [0], [0, 0, 1, 0], [], []>} : vector<8x32xbf16>, vector<128x32xbf16>, vector<8x128xf32> -> vector<8x128xf32>
    %c0_3 = arith.constant 0 : index
    %c0_4 = arith.constant 0 : index
    %5 = vector.load %arg3[%c0_3, %c0_4] : memref<2x128xf32, #tpu.memory_space<vmem>>, vector<1x128xf32>
    %c1 = arith.constant 1 : index
    %c0_5 = arith.constant 0 : index
    %6 = vector.load %arg3[%c1, %c0_5] : memref<2x128xf32, #tpu.memory_space<vmem>>, vector<1x128xf32>
    %cst_6 = arith.constant dense<0.000000e+00> : vector<128xf32>
    %7 = vector.multi_reduction <add>, %4, %cst_6 [0] : vector<8x128xf32> to vector<128xf32>
    %8 = vector.shape_cast %7 : vector<128xf32> to vector<1x128xf32>
    %cst_7 = arith.constant 8.000000e+00 : f32
    %9 = vector.broadcast %cst_7 : f32 to vector<1x128xf32>
    %10 = arith.divf %8, %9 : vector<1x128xf32>
    %11 = vector.broadcast %10 : vector<1x128xf32> to vector<8x128xf32>
    %12 = arith.subf %4, %11 : vector<8x128xf32>
    %13 = arith.mulf %12, %12 : vector<8x128xf32>
    %cst_8 = arith.constant dense<0.000000e+00> : vector<128xf32>
    %14 = vector.multi_reduction <add>, %13, %cst_8 [0] : vector<8x128xf32> to vector<128xf32>
    %15 = vector.shape_cast %14 : vector<128xf32> to vector<1x128xf32>
    %cst_9 = arith.constant 8.000000e+00 : f32
    %16 = vector.broadcast %cst_9 : f32 to vector<1x128xf32>
    %17 = arith.divf %15, %16 : vector<1x128xf32>
    %cst_10 = arith.constant 9.99999974E-6 : f32
    %18 = vector.broadcast %cst_10 : f32 to vector<1x128xf32>
    %19 = arith.addf %17, %18 : vector<1x128xf32>
    %20 = math.rsqrt %19 : vector<1x128xf32>
    %21 = arith.mulf %5, %20 : vector<1x128xf32>
    %22 = vector.broadcast %21 : vector<1x128xf32> to vector<8x128xf32>
    %23 = arith.mulf %12, %22 : vector<8x128xf32>
    %24 = vector.broadcast %6 : vector<1x128xf32> to vector<8x128xf32>
    %25 = arith.addf %23, %24 : vector<8x128xf32>
    %cst_11 = arith.constant 0.000000e+00 : f32
    %26 = vector.broadcast %cst_11 : f32 to vector<8x128xf32>
    %27 = arith.maximumf %25, %26 : vector<8x128xf32>
    %c0_12 = arith.constant 0 : index
    %c0_13 = arith.constant 0 : index
    %28 = vector.load %arg4[%c0_12, %c0_13] : memref<8x128xf32, #tpu.memory_space<vmem>>, vector<8x128xf32>
    tpu.vector_store %arg4[%c0_12, %c0_13], %27 {strides = array<i32>} : memref<8x128xf32, #tpu.memory_space<vmem>>, vector<8x128xf32>,
    return
  }
  func.func @transform_0(%arg0: i32) -> (i32, i32) {
    %c0_i32 = arith.constant 0 : i32
    %c0_i32_0 = arith.constant 0 : i32
    %c0_i32_1 = arith.constant 0 : i32
    return %c0_i32, %c0_i32_0 : i32, i32
  }
  func.func @transform_1(%arg0: i32) -> (i32, i32) {
    %c0_i32 = arith.constant 0 : i32
    %c0_i32_0 = arith.constant 0 : i32
    return %arg0, %c0_i32 : i32, i32
  }
  func.func @transform_2(%arg0: i32) -> (i32, i32) {
    %c0_i32 = arith.constant 0 : i32
    %c0_i32_0 = arith.constant 0 : i32
    return %c0_i32, %arg0 : i32, i32
  }
  func.func @transform_3(%arg0: i32) -> (i32, i32) {
    %c0_i32 = arith.constant 0 : i32
    %c0_i32_0 = arith.constant 0 : i32
    return %c0_i32, %arg0 : i32, i32
  }
}

</mosaic_0001>

<llo_original>
// kernel: tpu_custom_call.1
$region0: #{tpu_custom_call.1}
  #allocation0 [shape = 'u32[]', space=smem, size = 0x4, offset = 0x4, fixed_abs, tag = 'smem constant byte address 0x4 - core index']
  #allocation1 [shape = 'u32[72,128]{1,0:T(1,128)}', space=vmem, size = 0x9000, scoped, tag = 'internal scratch']
  %s0 = inlined_call_operand.vmem [shape: f32[8,32], index: 0, kind: input, shape index: {}]
  %s1 = inlined_call_operand.vmem [shape: f32[128,32], index: 1, kind: input, shape index: {}]
  %s2 = inlined_call_operand.vmem [shape: f32[2,128], index: 2, kind: input, shape index: {}]
  %s3 = inlined_call_operand.hbm [shape: f32[8,128], index: 3, kind: output, shape index: {}]
  %s4 = sld [smem:[#allocation0]]
  $region22: #{tpu_custom_call.1} parent=0
    _
  %s6 = ssub.s32 1, %s4
  %s7 = scalar_select 0, %s6, %s4
  $region1: #{tpu_custom_call.1} parent=0
    #allocation2 [shape = 'u8[4096]{0}', space=vmem, size = 0x1000, scoped, tag = 'output window, operand 0, single buffered']
    #allocation3 [shape = 's32[1]{0}', space=sflag, size = 0x4, scoped, tag = 'scoped memory for tpu_custom_call.1']
    %8 = vsyncpa [#allocation3], 0
    // Predicated region
    $region2: #{tpu_custom_call.1} parent=1 // pred_check
      _
    $region3: #{tpu_custom_call.1} parent=1 // pred_check_branch
      %10 = sbr.rel (0) target = $region5
    $region4: #{tpu_custom_call.1} parent=1 // pred_region
      _
    $region5: #{tpu_custom_call.1} parent=1 // pred_fallthru
      _
    // Predicated region
    $region6: #{tpu_custom_call.1} parent=1 // pred_check
      _
    $region7: #{tpu_custom_call.1} parent=1 // pred_check_branch
      %12 = sbr.rel (0) target = $region9
    $region8: #{tpu_custom_call.1} parent=1 // pred_region
      _
    $region9: #{tpu_custom_call.1} parent=1 // pred_fallthru
      _
    // Predicated region
    $region10: #{tpu_custom_call.1} parent=1 // pred_check
      _
    $region11: #{tpu_custom_call.1} parent=1 // pred_check_branch
      %14 = sbr.rel (0) target = $region13
    $region12: #{tpu_custom_call.1} parent=1 // pred_region
      _
    $region13: #{tpu_custom_call.1} parent=1 // pred_fallthru
      _
    %v15 = vld [vmem:[%s0] sm:$0xff]
    %v16 = vpack.c.bf16 %v15, %v15
    %v17 = vld [vmem:[%s1] sm:$0xff]
    %v18 = vld [vmem:[%s1 + $0x8] sm:$0xff]
    %v19 = vld [vmem:[%s1 + $0x10] sm:$0xff]
    %v20 = vld [vmem:[%s1 + $0x18] sm:$0xff]
    %v21 = vld [vmem:[%s1 + $0x20] sm:$0xff]
    %v22 = vld [vmem:[%s1 + $0x28] sm:$0xff]
    %v23 = vld [vmem:[%s1 + $0x30] sm:$0xff]
    %v24 = vld [vmem:[%s1 + $0x38] sm:$0xff]
    %v25 = vld [vmem:[%s1 + $0x40] sm:$0xff]
    %v26 = vld [vmem:[%s1 + $0x48] sm:$0xff]
    %v27 = vld [vmem:[%s1 + $0x50] sm:$0xff]
    %v28 = vld [vmem:[%s1 + $0x58] sm:$0xff]
    %v29 = vld [vmem:[%s1 + $0x60] sm:$0xff]
    %v30 = vld [vmem:[%s1 + $0x68] sm:$0xff]
    %v31 = vld [vmem:[%s1 + $0x70] sm:$0xff]
    %v32 = vld [vmem:[%s1 + $0x78] sm:$0xff]
    %v33 = vpack.c.bf16 %v18, %v17
    %v34 = vpack.c.bf16 %v20, %v19
    %v35 = vpack.c.bf16 %v22, %v21
    %v36 = vpack.c.bf16 %v24, %v23
    %v37 = vpack.c.bf16 %v26, %v25
    %v38 = vpack.c.bf16 %v28, %v27
    %v39 = vpack.c.bf16 %v30, %v29
    %v40 = vpack.c.bf16 %v32, %v31
    %vm41 = vcmask 261120
    %v43 = vsel %vm41, %v16, 0
    %v46 = vsel %vm41, %v33, 0
    %v49 = vsel %vm41, %v34, 0
    %v52 = vsel %vm41, %v35, 0
    %v55 = vsel %vm41, %v36, 0
    %v58 = vsel %vm41, %v37, 0
    %v61 = vsel %vm41, %v38, 0
    %v64 = vsel %vm41, %v39, 0
    %v67 = vsel %vm41, %v40, 0
    %69 = vmatpush.bf16.xpose.msra.mxu0 %v67
    %70 = vmatpush.bf16.xpose.msra.mxu0 %v64
    %71 = vmatpush.bf16.xpose.msra.mxu0 %v61
    %72 = vmatpush.bf16.xpose.msra.mxu0 %v58
    %73 = vmatpush.bf16.xpose.msra.mxu0 %v55
    %74 = vmatpush.bf16.xpose.msra.mxu0 %v52
    %75 = vmatpush.bf16.xpose.msra.mxu0 %v49
    %76 = vmatpush.bf16.xpose.msra.mxu0 %v46
    %77 = vmatmul.bf16.gmra.mxu0 %v43
    %v78 = vpop.f32.mrf.mxu0
    %v79 = vadd.f32 0.0, %v78
    %v80 = vpop.f32.mrf.mxu0
    %81 = vdwg.mxu0
    %v82 = vld [vmem:[%s2] sm:$0x1]
    %v83 = vld [vmem:[%s2 + $0x1] sm:$0x1]
    %v84 = vrot.slane %v79, 4
    %v85 = vadd.f32 %v79, %v84
    %v86 = vrot.slane %v85, 2
    %v87 = vadd.f32 %v85, %v86
    %v88 = vrot.slane %v87, 1
    %v89 = vadd.f32 %v87, %v88
    %v90 = vrcp.pop 8.0
    %v91 = vmul.f32 8.0, %v90
    %v92 = vsub.f32 1.0, %v91
    %v93 = vmul.f32 %v90, %v92
    %v94 = vadd.f32 %v90, %v93
    %vm95 = vweird.f32 %v90
    %v96 = vsel %vm95, %v90, %v94
    %v97 = vmul.f32 %v89, %v96
    %v98 = vsub.f32 %v79, %v97
    %v99 = vmul.f32 %v98, %v98
    %v100 = vrot.slane %v99, 4
    %v101 = vadd.f32 %v99, %v100
    %v102 = vrot.slane %v101, 2
    %v103 = vadd.f32 %v101, %v102
    %v104 = vrot.slane %v103, 1
    %v105 = vadd.f32 %v103, %v104
    %v106 = vmul.f32 %v105, %v96
    %v107 = vadd.f32 %v106, 1e-05
    %v108 = vrsqrt.pop %v107
    %v109 = vmul.f32 %v108, %v107
    %v110 = vmul.f32 %v109, %v108
    %v111 = vmul.f32 0.5, %v110
    %v112 = vsub.f32 1.5, %v111
    %v113 = vmul.f32 %v108, %v112
    %vm114 = vweird.f32 %v107
    %vm115 = vweird.f32 %v108
    %vm116 = vmor %vm114, %vm115
    %v117 = vsel %vm116, %v108, %v113
    %v118 = vmul.f32 %v82, %v117
    %v119 = vperm.slane %v118, 0
    %v120 = vmul.f32 %v98, %v119
    %v121 = vperm.slane %v83, 0
    %v122 = vadd.f32 %v120, %v121
    %v123 = vmax.f32 %v122, 0.0
    %124 = vst [vmem:[#allocation2] sm:$0xff] %v123
    // Predicated region
    $region14: #{tpu_custom_call.1} parent=1 // pred_check
      _
    $region15: #{tpu_custom_call.1} parent=1 // pred_check_branch
      %126 = sbr.rel (0) target = $region17
    $region16: #{tpu_custom_call.1} parent=1 // pred_region
      %128 = vsyncadd [#allocation3], 0
      %s130 = sshll.u32 [#allocation2], 4
      %s131 = int_to_ptr.vmem [resolvable:$true] %s130
      %s132 = sshll.u32 %s3, 4
      %s133 = int_to_ptr.hbm [resolvable:$true] %s132
      %135 = dma.vmem_to_hbm [thread:$0]  %s131, 128, %s133, [#allocation3]
    $region17: #{tpu_custom_call.1} parent=1 // pred_fallthru
      _
    // Predicated region
    $region18: #{tpu_custom_call.1} parent=1 // pred_check
      _
    $region19: #{tpu_custom_call.1} parent=1 // pred_check_branch
      %137 = sbr.rel (0) target = $region21
    $region20: #{tpu_custom_call.1} parent=1 // pred_region
      %139 = dma.done [#allocation3], 128
    $region21: #{tpu_custom_call.1} parent=1 // pred_fallthru
      _
    %140 = vsyncpa [#allocation3], 1

</llo_original>
